<compile_context>
chip_gen: v6e
topology: v6e:2x2x1
jax: 0.10.0
libtpu: 0.0.40
codegen_flags: <defaults>
</compile_context>

<pallas_src>
import functools

import jax
import jax.numpy as jnp
from jax.experimental import pallas as pl
from jax.experimental.pallas import tpu as pltpu


# ----------------------------------------------------------------------------
# capability probes / tuning helpers
# ----------------------------------------------------------------------------
_SINGLE_BUF = None
_VMEM_LIMIT = None


def _single_buffering_supported():
    """True if pl.Buffered(1) (single-buffered grid-invariant operands) works."""
    global _SINGLE_BUF
    if _SINGLE_BUF is None:
        try:
            def k(x_ref, o_ref):
                o_ref[...] = x_ref[...] + 1.0

            out = pl.pallas_call(
                k,
                out_shape=jax.ShapeDtypeStruct((16, 128), jnp.float32),
                grid=(2,),
                in_specs=[pl.BlockSpec((8, 128), lambda i: (0, 0),
                                       pipeline_mode=pl.Buffered(1))],
                out_specs=pl.BlockSpec((8, 128), lambda i: (i, 0)),
            )(jnp.ones((8, 128), jnp.float32))
            jax.block_until_ready(out)
            _SINGLE_BUF = True
        except Exception:
            _SINGLE_BUF = False
    return _SINGLE_BUF


def _vmem_limit_bytes():
    """~half of physical VMEM: 64 MiB on v5e/v6e (128 MiB), 32 MiB on v7x."""
    global _VMEM_LIMIT
    if _VMEM_LIMIT is None:
        try:
            cap = pltpu.get_tpu_info().vmem_capacity_bytes
        except Exception:
            cap = 128 << 20
        _VMEM_LIMIT = int(max(32 << 20, min(64 << 20, cap // 2)))
    return _VMEM_LIMIT


def _pick_nb(N, Ho, Wo):
    """Images per grid step: target M = nb*Ho*Wo in ~[256, 1024], but keep at
    least 2 grid steps when the batch allows it (v7x shards 'parallel' grid
    axes across its 2 TensorCores)."""
    hw = Ho * Wo
    best = 1
    for nb in range(1, N + 1):
        if N % nb == 0 and nb * hw <= 1024:
            best = nb
    if N // best == 1 and N >= 2:
        for nb in range(best, 0, -1):
            if N % nb == 0 and N // nb >= 2:
                best = nb
                break
    return best


# ----------------------------------------------------------------------------
# Pallas kernel: fused conv + folded BN (+ residual add) (+ ReLU)
# ----------------------------------------------------------------------------
def _conv_bn_kernel(*refs, KH, KW, stride, padding, Ho, Wo, relu,
                    has_short, pad_in_kernel, needs_patch):
    """One grid step computes the conv for `nb` images (M = nb*Ho*Wo rows).

    refs (in order):
      x_ref  : stride == 1 -> (nb, H, W, Cin)          bf16, unpadded
               stride  > 1 -> (nb, Hp/s, s, Wp/s, s*Cin) bf16, padded+phase-
                              reshaped in the wrapper (free row-major reshape)
      w_ref  : (KH*KW*Cin, Cout)  bf16 weights
      s_ref  : (1, Cout)  folded BN scale (f32)
      b_ref  : (1, Cout)  folded BN bias  (f32)
      short_ref (optional) : (nb, Ho, Wo, Cout) residual shortcut (bf16)
      o_ref  : (nb, Ho, Wo, Cout) bf16
      patch_ref (if needs_patch): (M, KH*KW*Cin) bf16 im2col scratch
      xp_ref (if pad_in_kernel) : (nb, H+2p, W+2p, Cin) bf16 pad scratch
    """
    idx = 0
    x_ref = refs[idx]; idx += 1
    w_ref = refs[idx]; idx += 1
    s_ref = refs[idx]; idx += 1
    b_ref = refs[idx]; idx += 1
    short_ref = None
    if has_short:
        short_ref = refs[idx]; idx += 1
    o_ref = refs[idx]; idx += 1
    patch_ref = None
    if needs_patch:
        patch_ref = refs[idx]; idx += 1
    xp_ref = refs[idx] if pad_in_kernel else None

    nb = o_ref.shape[0]
    cout = o_ref.shape[3]
    M = nb * Ho * Wo
    cin = x_ref.shape[3] if stride == 1 else x_ref.shape[4] // stride

    if pad_in_kernel:
        # Zero only the halo slabs (not the whole buffer), then copy interior.
        p = padding
        h_in, w_in = x_ref.shape[1], x_ref.shape[2]
        wp = w_in + 2 * p
        zrow = jnp.zeros((nb, p, wp, cin), xp_ref.dtype)
        zcol = jnp.zeros((nb, h_in, p, cin), xp_ref.dtype)
        xp_ref[:, :p, :, :] = zrow                      # top halo
        xp_ref[:, p + h_in:, :, :] = zrow               # bottom halo
        xp_ref[:, p:p + h_in, :p, :] = zcol             # left halo
        xp_ref[:, p:p + h_in, p + w_in:, :] = zcol      # right halo
        xp_ref[:, p:p + h_in, p:p + w_in, :] = x_ref[...]

    planes = None
    if stride > 1:
        # planes[ph][:, h2, w2, pw*cin:(pw+1)*cin] holds padded pixel
        # (stride*h2 + ph, stride*w2 + pw) -- every tap becomes a static slice.
        planes = [x_ref[:, :, ph, :, :] for ph in range(stride)]

    def tap(kh, kw):
        """(nb, Ho, Wo, cin) slab of input feeding weight tap (kh, kw)."""
        if stride == 1:
            src = xp_ref if pad_in_kernel else x_ref
            return src[:, kh:kh + Ho, kw:kw + Wo, :]
        ph, oh = kh % stride, kh // stride
        pw, ow = kw % stride, kw // stride
        return planes[ph][:, oh:oh + Ho, ow:ow + Wo, pw * cin:(pw + 1) * cin]

    # Single im2col matmul: (M, KH*KW*Cin) x (KH*KW*Cin, Cout), f32 accumulate.
    if needs_patch:
        for kh in range(KH):
            for kw in range(KW):
                col = (kh * KW + kw) * cin
                patch_ref[:, col:col + cin] = tap(kh, kw).reshape(M, cin)
        patch = patch_ref[...]
    else:
        patch = tap(0, 0).reshape(M, cin)

    acc = jnp.dot(patch, w_ref[...], preferred_element_type=jnp.float32)

    # Epilogue in f32: folded BN, optional fused residual add, optional ReLU.
    out = acc * s_ref[...] + b_ref[...]
    if has_short:
        out = out + short_ref[...].reshape(M, cout).astype(jnp.float32)
    if relu:
        out = jnp.maximum(out, 0.0)
    o_ref[...] = out.reshape(nb, Ho, Wo, cout).astype(o_ref.dtype)


# ----------------------------------------------------------------------------
# Wrapper around pallas_call
# ----------------------------------------------------------------------------
def conv_bn(x, w, scale, bias, *, stride, padding, relu, shortcut=None):
    """x: (N,H,W,Cin); w: (KH,KW,Cin,Cout). Conv + folded BN (+add)(+ReLU).

    Activations are stored in bf16; the epilogue is computed in f32.
    """
    x = x.astype(jnp.bfloat16)
    N, H, W, Cin = x.shape
    KH, KW, _, Cout = w.shape

    # A 1x1 strided conv only touches the strided sub-grid: subsample up front
    # (reads 1/stride^2 of the data) and run as a stride-1 matmul.
    if KH == 1 and KW == 1 and stride > 1:
        x = x[:, ::stride, ::stride, :]
        N, H, W, Cin = x.shape
        stride = 1

    Ho = (H + 2 * padding - KH) // stride + 1
    Wo = (W + 2 * padding - KW) // stride + 1
    K = KH * KW * Cin

    pad_in_kernel = (stride == 1 and padding > 0)
    needs_patch = (KH * KW > 1)

    if stride == 1:
        x_in = x
        x_spec = pl.BlockSpec((None,), None)  # placeholder, set below
    else:
        Hp, Wp = H + 2 * padding, W + 2 * padding
        assert Hp % stride == 0 and Wp % stride == 0, (
            "strided conv expects padded spatial dims divisible by stride")
        # Pad once in HBM; the phase split is a free row-major reshape, so no
        # strided per-phase HBM gathers are materialized.
        xp = jnp.pad(x, ((0, 0), (padding, padding), (padding, padding), (0, 0)))
        x_in = xp.reshape(N, Hp // stride, stride, Wp // stride, stride * Cin)

    nb = _pick_nb(N, Ho, Wo)
    grid = (N // nb,)
    M = nb * Ho * Wo

    w2d = w.reshape(K, Cout).astype(jnp.bfloat16)
    s2d = scale.reshape(1, Cout).astype(jnp.float32)
    b2d = bias.reshape(1, Cout).astype(jnp.float32)

    single_buf = _single_buffering_supported()

    def const_spec(shape):
        # Grid-invariant operand: single-buffer it when supported (saves VMEM,
        # especially for the 4.5 MiB deep-layer weights on v7x).
        kwargs = {}
        if single_buf:
            kwargs['pipeline_mode'] = pl.Buffered(1)
        return pl.BlockSpec(shape, lambda n: (0,) * len(shape), **kwargs)

    if stride == 1:
        x_spec = pl.BlockSpec((nb, H, W, Cin), lambda n: (n, 0, 0, 0))
    else:
        x_spec = pl.BlockSpec(
            (nb, Hp // stride, stride, Wp // stride, stride * Cin),
            lambda n: (n, 0, 0, 0, 0))

    in_specs = [x_spec,
                const_spec((K, Cout)),
                const_spec((1, Cout)),
                const_spec((1, Cout))]
    inputs = [x_in, w2d, s2d, b2d]
    if shortcut is not None:
        in_specs.append(pl.BlockSpec((nb, Ho, Wo, Cout), lambda n: (n, 0, 0, 0)))
        inputs.append(shortcut.astype(jnp.bfloat16))

    scratch = []
    if needs_patch:
        scratch.append(pltpu.VMEM((M, K), jnp.bfloat16))
    if pad_in_kernel:
        scratch.append(pltpu.VMEM((nb, H + 2 * padding, W + 2 * padding, Cin),
                                  jnp.bfloat16))

    kernel = functools.partial(
        _conv_bn_kernel, KH=KH, KW=KW, stride=stride, padding=padding,
        Ho=Ho, Wo=Wo, relu=relu, has_short=shortcut is not None,
        pad_in_kernel=pad_in_kernel, needs_patch=needs_patch)

    return pl.pallas_call(
        kernel,
        out_shape=jax.ShapeDtypeStruct((N, Ho, Wo, Cout), jnp.bfloat16),
        grid=grid,
        in_specs=in_specs,
        out_specs=pl.BlockSpec((nb, Ho, Wo, Cout), lambda n: (n, 0, 0, 0)),
        scratch_shapes=scratch,
        compiler_params=pltpu.CompilerParams(
            dimension_semantics=("parallel",),
            vmem_limit_bytes=_vmem_limit_bytes()),
    )(*inputs)


def _im2col(x, KH, KW, stride, padding):
    """(N,H,W,C) -> (N,Ho,Wo,KH*KW*C), channel order (kh, kw, c)."""
    N, H, W, C = x.shape
    xp = jnp.pad(x, ((0, 0), (padding, padding), (padding, padding), (0, 0)))
    Ho = (H + 2 * padding - KH) // stride + 1
    Wo = (W + 2 * padding - KW) // stride + 1
    cols = [xp[:, kh:kh + stride * Ho:stride, kw:kw + stride * Wo:stride, :]
            for kh in range(KH) for kw in range(KW)]
    return jnp.concatenate(cols, axis=-1)


# ----------------------------------------------------------------------------
# Parameter initialization (deterministic, synthetic)
# ----------------------------------------------------------------------------
def _kaiming(key, shape):
    fan_in = shape[0] * shape[1] * shape[2]
    return jax.random.normal(key, shape, jnp.float32) * jnp.sqrt(2.0 / fan_in)


def _bn_fold(key, c, eps=1e-5):
    k1, k2 = jax.random.split(key)
    gamma = 1.0 + 0.1 * jax.random.normal(k1, (c,), jnp.float32)
    beta = 0.1 * jax.random.normal(k2, (c,), jnp.float32)
    mean = jnp.zeros((c,), jnp.float32)
    var = jnp.ones((c,), jnp.float32)
    scale = gamma / jnp.sqrt(var + eps)
    bias = beta - mean * scale
    return scale, bias


def init_resnet_params(key, layers=(1, 1, 1, 1)):
    keys = iter(jax.random.split(key, 512))
    params = {'conv1_w': _kaiming(next(keys), (3, 3, 3, 64))}
    params['bn1_s'], params['bn1_b'] = _bn_fold(next(keys), 64)

    inplanes = 64
    all_layers = []
    for planes, nblocks, stride in zip((64, 128, 256, 512), layers,
                                       (1, 2, 2, 2)):
        blocks = []
        strides = [stride] + [1] * (nblocks - 1)
        for s in strides:
            p = {}
            p['w1'] = _kaiming(next(keys), (3, 3, inplanes, planes))
            p['s1'], p['b1'] = _bn_fold(next(keys), planes)
            p['w2'] = _kaiming(next(keys), (3, 3, planes, planes))
            p['s2'], p['b2'] = _bn_fold(next(keys), planes)
            if s != 1 or inplanes != planes:
                p['wd'] = _kaiming(next(keys), (1, 1, inplanes, planes))
                p['sd'], p['bd'] = _bn_fold(next(keys), planes)
            blocks.append((p, s))
            inplanes = planes
        all_layers.append(blocks)
    params['layers'] = all_layers
    return params


# ----------------------------------------------------------------------------
# ResNet forward (Pallas) and a pure-JAX reference
# ----------------------------------------------------------------------------
def basic_block(x, p, stride):
    if 'wd' in p:
        shortcut = conv_bn(x, p['wd'], p['sd'], p['bd'], stride=stride,
                           padding=0, relu=False)
    else:
        shortcut = x
    out = conv_bn(x, p['w1'], p['s1'], p['b1'], stride=stride, padding=1,
                  relu=True)
    # Residual add + final ReLU fused into the second conv's epilogue.
    out = conv_bn(out, p['w2'], p['s2'], p['b2'], stride=1, padding=1,
                  relu=True, shortcut=shortcut)
    return out


def resnet_forward(x_nchw, params):
    # NCHW (PyTorch) -> NHWC for the kernels; activations stored in bf16.
    x = jnp.transpose(x_nchw, (0, 2, 3, 1)).astype(jnp.bfloat16)
    # conv1 (Cin=3): im2col so the MXU contraction is one matmul; pad K 27->32.
    patches = _im2col(x, 3, 3, 1, 1)
    patches = jnp.pad(patches, ((0, 0), (0, 0), (0, 0), (0, 5)))
    w1 = jnp.pad(params['conv1_w'].reshape(27, 64), ((0, 5), (0, 0)))
    out = conv_bn(patches, w1.reshape(1, 1, 32, 64),
                  params['bn1_s'], params['bn1_b'],
                  stride=1, padding=0, relu=True)
    for blocks in params['layers']:
        for p, s in blocks:
            out = basic_block(out, p, s)
    # back to NCHW, matching the PyTorch module's return value.
    return jnp.transpose(out, (0, 3, 1, 2)).astype(jnp.float32)


# ----- pure-JAX reference (same bf16-storage / f32-accumulate numerics) -----
def _conv_bn_ref(x, w, scale, bias, stride, padding, relu):
    out = jax.lax.conv_general_dilated(
        x.astype(jnp.bfloat16), w.astype(jnp.bfloat16),
        (stride, stride), [(padding, padding), (padding, padding)],
        dimension_numbers=('NHWC', 'HWIO', 'NHWC'),
        preferred_element_type=jnp.float32)
    out = out * scale + bias
    return jnp.maximum(out, 0.0) if relu else out


def resnet_forward_ref(x_nchw, params):
    x = jnp.transpose(x_nchw, (0, 2, 3, 1))
    out = _conv_bn_ref(x, params['conv1_w'], params['bn1_s'], params['bn1_b'],
                       1, 1, True).astype(jnp.bfloat16)
    for blocks in params['layers']:
        for p, s in blocks:
            y = _conv_bn_ref(out, p['w1'], p['s1'], p['b1'], s, 1, True
                             ).astype(jnp.bfloat16)
            y = _conv_bn_ref(y, p['w2'], p['s2'], p['b2'], 1, 1, False)
            if 'wd' in p:
                sc = _conv_bn_ref(out, p['wd'], p['sd'], p['bd'], s, 0, False
                                  ).astype(jnp.bfloat16)
            else:
                sc = out
            out = jnp.maximum(y + sc.astype(jnp.float32), 0.0
                              ).astype(jnp.bfloat16)
    return jnp.transpose(out, (0, 3, 1, 2)).astype(jnp.float32)


# ----------------------------------------------------------------------------
if __name__ == "__main__":
    key = jax.random.PRNGKey(0)
    kx, kp = jax.random.split(key)

    # small deterministic input: batch=2, 3 channels, 16x16 spatial (NCHW)
    x = jax.random.normal(kx, (2, 3, 16, 16), jnp.float32)
    params = init_resnet_params(kp, layers=(1, 1, 1, 1))

    out = jax.block_until_ready(resnet_forward(x, params))
    assert out.shape == (2, 512, 2, 2), out.shape

    ref = jax.block_until_ready(resnet_forward_ref(x, params))
    out32 = out.astype(jnp.float32)
    ref32 = ref.astype(jnp.float32)
    rel_err = float(jnp.max(jnp.abs(out32 - ref32)) /
                    (jnp.max(jnp.abs(ref32)) + 1e-6))
    assert rel_err < 1e-2, f"numerical mismatch vs reference: {rel_err}"

    print("KERNEL_OK")
</pallas_src>

<mosaic_0001>
module attributes {stable_mosaic.version = 11 : i64} {
  func.func @k(%arg0: i32, %arg1: memref<8x128xf32, #tpu.memory_space<vmem>>, %arg2: memref<8x128xf32, #tpu.memory_space<vmem>>) attributes {dimension_semantics = [#tpu.dimension_semantics<arbitrary>], iteration_bounds = array<i64: 2>, scalar_prefetch = 0 : i64, scratch_operands = 0 : i64, tpu.core_type = #tpu.core_type<tc>, window_params = [{pipeline_mode = #tpu.pipeline_mode<synchronous>, transform_indices = @transform_0, window_bounds = array<i64: 8, 128>}, {transform_indices = @transform_1, window_bounds = array<i64: 8, 128>}]} {
    %c0 = arith.constant 0 : index
    %c0_0 = arith.constant 0 : index
    %0 = vector.load %arg1[%c0, %c0_0] : memref<8x128xf32, #tpu.memory_space<vmem>>, vector<8x128xf32>
    %cst = arith.constant 1.000000e+00 : f32
    %1 = vector.broadcast %cst : f32 to vector<8x128xf32>
    %2 = arith.addf %0, %1 : vector<8x128xf32>
    %c0_1 = arith.constant 0 : index
    %c0_2 = arith.constant 0 : index
    %3 = vector.load %arg2[%c0_1, %c0_2] : memref<8x128xf32, #tpu.memory_space<vmem>>, vector<8x128xf32>
    tpu.vector_store %arg2[%c0_1, %c0_2], %2 {strides = array<i32>} : memref<8x128xf32, #tpu.memory_space<vmem>>, vector<8x128xf32>,
    return
  }
  func.func @transform_0(%arg0: i32) -> (i32, i32) {
    %c0_i32 = arith.constant 0 : i32
    %c0_i32_0 = arith.constant 0 : i32
    %c0_i32_1 = arith.constant 0 : i32
    return %c0_i32, %c0_i32_0 : i32, i32
  }
  func.func @transform_1(%arg0: i32) -> (i32, i32) {
    %c0_i32 = arith.constant 0 : i32
    %c0_i32_0 = arith.constant 0 : i32
    return %arg0, %c0_i32 : i32, i32
  }
}

module attributes {stable_mosaic.version = 11 : i64} {
  func.func @_conv_bn_kernel(%arg0: i32, %arg1: memref<1x16x16x32xbf16, #tpu.memory_space<vmem>>, %arg2: memref<32x64xbf16, #tpu.memory_space<vmem>>, %arg3: memref<1x64xf32, #tpu.memory_space<vmem>>, %arg4: memref<1x64xf32, #tpu.memory_space<vmem>>, %arg5: memref<1x16x16x64xbf16, #tpu.memory_space<vmem>>) attributes {dimension_semantics = [#tpu.dimension_semantics<parallel>], iteration_bounds = array<i64: 2>, scalar_prefetch = 0 : i64, scratch_operands = 0 : i64, tpu.core_type = #tpu.core_type<tc>, window_params = [{transform_indices = @transform_0, window_bounds = array<i64: 1, 16, 16, 32>}, {pipeline_mode = #tpu.pipeline_mode<synchronous>, transform_indices = @transform_1, window_bounds = array<i64: 32, 64>}, {pipeline_mode = #tpu.pipeline_mode<synchronous>, transform_indices = @transform_2, window_bounds = array<i64: 1, 64>}, {pipeline_mode = #tpu.pipeline_mode<synchronous>, transform_indices = @transform_3, window_bounds = array<i64: 1, 64>}, {transform_indices = @transform_4, window_bounds = array<i64: 1, 16, 16, 64>}]} {
    %c0 = arith.constant 0 : index
    %c0_0 = arith.constant 0 : index
    %c0_1 = arith.constant 0 : index
    %c0_2 = arith.constant 0 : index
    %0 = vector.load %arg1[%c0, %c0_0, %c0_1, %c0_2] : memref<1x16x16x32xbf16, #tpu.memory_space<vmem>>, vector<1x16x16x32xbf16>
    %1 = vector.shape_cast %0 : vector<1x16x16x32xbf16> to vector<256x32xbf16>
    %c0_3 = arith.constant 0 : index
    %c0_4 = arith.constant 0 : index
    %2 = vector.load %arg2[%c0_3, %c0_4] : memref<32x64xbf16, #tpu.memory_space<vmem>>, vector<32x64xbf16>
    %cst = arith.constant dense<0.000000e+00> : vector<256x64xf32>
    %3 = tpu.matmul %1, %2, %cst {dimension_numbers = #tpu.dot_dimension_numbers<[1], [0], [0], [1], [0, 0, 1, 1], [], []>} : vector<256x32xbf16>, vector<32x64xbf16>, vector<256x64xf32> -> vector<256x64xf32>
    %c0_5 = arith.constant 0 : index
    %c0_6 = arith.constant 0 : index
    %4 = vector.load %arg3[%c0_5, %c0_6] : memref<1x64xf32, #tpu.memory_space<vmem>>, vector<1x64xf32>
    %5 = vector.broadcast %4 : vector<1x64xf32> to vector<256x64xf32>
    %6 = arith.mulf %3, %5 : vector<256x64xf32>
    %c0_7 = arith.constant 0 : index
    %c0_8 = arith.constant 0 : index
    %7 = vector.load %arg4[%c0_7, %c0_8] : memref<1x64xf32, #tpu.memory_space<vmem>>, vector<1x64xf32>
    %8 = vector.broadcast %7 : vector<1x64xf32> to vector<256x64xf32>
    %9 = arith.addf %6, %8 : vector<256x64xf32>
    %cst_9 = arith.constant 0.000000e+00 : f32
    %10 = vector.broadcast %cst_9 : f32 to vector<256x64xf32>
    %11 = arith.maximumf %9, %10 : vector<256x64xf32>
    %12 = vector.shape_cast %11 : vector<256x64xf32> to vector<1x16x16x64xf32>
    %13 = arith.truncf %12 : vector<1x16x16x64xf32> to vector<1x16x16x64xbf16>
    %c0_10 = arith.constant 0 : index
    %c0_11 = arith.constant 0 : index
    %c0_12 = arith.constant 0 : index
    %c0_13 = arith.constant 0 : index
    %14 = vector.load %arg5[%c0_10, %c0_11, %c0_12, %c0_13] : memref<1x16x16x64xbf16, #tpu.memory_space<vmem>>, vector<1x16x16x64xbf16>
    tpu.vector_store %arg5[%c0_10, %c0_11, %c0_12, %c0_13], %13 {strides = array<i32>} : memref<1x16x16x64xbf16, #tpu.memory_space<vmem>>, vector<1x16x16x64xbf16>,
    return
  }
  func.func @transform_0(%arg0: i32) -> (i32, i32, i32, i32) {
    %c0_i32 = arith.constant 0 : i32
    %c0_i32_0 = arith.constant 0 : i32
    %c0_i32_1 = arith.constant 0 : i32
    %c0_i32_2 = arith.constant 0 : i32
    return %arg0, %c0_i32, %c0_i32_0, %c0_i32_1 : i32, i32, i32, i32
  }
  func.func @transform_1(%arg0: i32) -> (i32, i32) {
    %c0_i32 = arith.constant 0 : i32
    %c0_i32_0 = arith.constant 0 : i32
    %c0_i32_1 = arith.constant 0 : i32
    return %c0_i32, %c0_i32_0 : i32, i32
  }
  func.func @transform_2(%arg0: i32) -> (i32, i32) {
    %c0_i32 = arith.constant 0 : i32
    %c0_i32_0 = arith.constant 0 : i32
    %c0_i32_1 = arith.constant 0 : i32
    return %c0_i32, %c0_i32_0 : i32, i32
  }
  func.func @transform_3(%arg0: i32) -> (i32, i32) {
    %c0_i32 = arith.constant 0 : i32
    %c0_i32_0 = arith.constant 0 : i32
    %c0_i32_1 = arith.constant 0 : i32
    return %c0_i32, %c0_i32_0 : i32, i32
  }
  func.func @transform_4(%arg0: i32) -> (i32, i32, i32, i32) {
    %c0_i32 = arith.constant 0 : i32
    %c0_i32_0 = arith.constant 0 : i32
    %c0_i32_1 = arith.constant 0 : i32
    %c0_i32_2 = arith.constant 0 : i32
    return %arg0, %c0_i32, %c0_i32_0, %c0_i32_1 : i32, i32, i32, i32
  }
}

</mosaic_0001>

<llo_original>
// kernel: tpu_custom_call.1
$region0: #{tpu_custom_call.1}
  #allocation0 [shape = 'u32[]', space=smem, size = 0x4, offset = 0x4, fixed_abs, tag = 'smem constant byte address 0x4 - core index']
  #allocation1 [shape = 'u32[144,128]{1,0:T(1,128)}', space=vmem, size = 0x12000, scoped, tag = 'internal scratch']
  %s0 = inlined_call_operand.hbm [shape: f32[8,128], index: 0, kind: input, shape index: {}]
  %s1 = inlined_call_operand.hbm [shape: f32[16,128], index: 1, kind: output, shape index: {}]
  %s2 = sld [smem:[#allocation0]]
  $region41: #{tpu_custom_call.1} parent=0
    _
  %s4 = ssub.s32 1, %s2
  %s5 = scalar_select 0, %s4, %s2
  $region1: #{tpu_custom_call.1} parent=0
    #allocation2 [shape = 'u8[4096]{0}', space=vmem, size = 0x1000, scoped, tag = 'input window, operand 0, single buffered']
    #allocation3 [shape = 's32[2]{0}', space=sflag, size = 0x8, scoped, tag = 'scoped memory for tpu_custom_call.1']
    #allocation4 [shape = 's32[2]{0}', space=sflag, size = 0x8, scoped, tag = 'scoped memory for tpu_custom_call.1']
    #allocation5 [shape = 'u8[8192]{0}', space=vmem, size = 0x2000, scoped, tag = 'output window, operand 0']
    %6 = vsyncpa [#allocation3], 0
    %7 = vsyncpa [#allocation4], 0
    %s8 = scalar_lea.sflag [#allocation4], 1
    %9 = vsyncpa %s8, 0
    loop: start=0, step=1, limit=4
    $region2: #{tpu_custom_call.1} parent=1 // loop_pre_header
      _
    $region3: #{tpu_custom_call.1} parent=1 // loop_header
      %s11 = sphi 0, %s15
      %p12 = scmp.ge.s32.totalorder %s11, 4
      %s19 = sphi 0, %s19
      %s21 = sphi 0, %s19
      %s22 = sphi 0, %s21
      %s36 = sphi 0, %s22
      %s42 = sphi 0, %s44
      %s45 = sphi 0, %s42
      %s46 = sphi 0, %s45
      %s62 = sphi 0, %s46
    $region4: #{tpu_custom_call.1} parent=1 // loop_header_branch
      %14 = sbr.rel (%p12) target = $region8
    $region5: #{tpu_custom_call.1} parent=1 // loop_body
      %s16 = ssub.s32 %s11, 1
      %s17 = ssub.s32 %s11, 2
      %s18 = sadd.s32 %s11, 1
      %s20 = sadd.s32 %s19, 1
      %p23 = scmp.eq.s32.totalorder %s11, 1
      %p24 = scmp.ne.s32.totalorder %s19, %s21
      %p25 = scmp.eq.s32.totalorder %s11, 0
      %p26 = por %p24, %p25
      %p27 = scmp.ne.s32.totalorder %s19, %s21
      %p28 = scmp.eq.s32.totalorder %s16, 1
      %p29 = por %p27, %p28
      %p30 = scmp.ne.s32.totalorder %s21, %s22
      %p31 = scmp.eq.s32.totalorder %s16, 0
      %p32 = por %p30, %p31
      %p33 = scmp.ne.s32.totalorder %s21, %s22
      %p34 = scmp.eq.s32.totalorder %s17, 1
      %p35 = por %p33, %p34
      %p37 = scmp.ne.s32.totalorder %s22, %s36
      %p38 = scmp.eq.s32.totalorder %s17, 0
      %p39 = por %p37, %p38
      %s40 = ssub.s32 %s11, %s18
      %p41 = scmp.eq.s32.totalorder %s40, 0
      %s43 = sadd.s32 %s42, 1
      %s44 = scalar_select %p41, %s42, %s43
      %p47 = pneg %p41
      %p48 = scmp.eq.s32.totalorder %s11, 1
      %p49 = por %p47, %p48
      %p50 = scmp.ne.s32.totalorder %s42, %s45
      %p51 = scmp.eq.s32.totalorder %s11, 0
      %p52 = por %p50, %p51
      %p53 = scmp.ne.s32.totalorder %s42, %s45
      %p54 = scmp.eq.s32.totalorder %s16, 1
      %p55 = por %p53, %p54
      %p56 = scmp.ne.s32.totalorder %s45, %s46
      %p57 = scmp.eq.s32.totalorder %s16, 0
      %p58 = por %p56, %p57
      %p59 = scmp.ne.s32.totalorder %s45, %s46
      %p60 = scmp.eq.s32.totalorder %s17, 1
      %p61 = por %p59, %p60
      %p63 = scmp.ne.s32.totalorder %s46, %s62
      %p64 = scmp.eq.s32.totalorder %s17, 0
      %p65 = por %p63, %p64
      %p66 = scmp.le.s32.totalorder 1, %s11
      %p67 = scmp.lt.s32.totalorder %s11, 3
      %p68 = pnand %p66, %p67
      %p69 = pneg %p68
      // Predicated region
      $region9: #{tpu_custom_call.1} parent=5 // pred_check
        _
      $region10: #{tpu_custom_call.1} parent=5 // pred_check_branch
        %71 = sbr.rel (%p68) target = $region12
      $region11: #{tpu_custom_call.1} parent=5 // pred_region
        %s72 = ssub.s32 %s11, 1
        // Predicated region
        $region13: #{tpu_custom_call.1} parent=11 // pred_check
          %p73 = pneg %p32
        $region14: #{tpu_custom_call.1} parent=11 // pred_check_branch
          %75 = sbr.rel (%p73) target = $region16
        $region15: #{tpu_custom_call.1} parent=11 // pred_region
          %s77 = ssub.s32 128, 128
          %78 = vsyncadd [#allocation3], %s77
          %s80 = sshll.u32 [#allocation2], 4
          %s81 = int_to_ptr.vmem [resolvable:$true] %s80
          %83 = dma.hbm_to_vmem [thread:$0]  %s0, 128, %s81, [#allocation3]
        $region16: #{tpu_custom_call.1} parent=11 // pred_fallthru
          _
      $region12: #{tpu_custom_call.1} parent=5 // pred_fallthru
        _
      %p84 = scmp.lt.s32.totalorder %s11, 2
      // Predicated region
      $region17: #{tpu_custom_call.1} parent=5 // pred_check
        %p85 = pneg %p84
      $region18: #{tpu_custom_call.1} parent=5 // pred_check_branch
        %87 = sbr.rel (%p85) target = $region20
      $region19: #{tpu_custom_call.1} parent=5 // pred_region
        _
      $region20: #{tpu_custom_call.1} parent=5 // pred_fallthru
        _
      %p88 = scmp.le.s32.totalorder 1, %s11
      %p89 = scmp.lt.s32.totalorder %s11, 3
      %p90 = pnand %p88, %p89
      %p91 = pneg %p90
      // Predicated region
      $region21: #{tpu_custom_call.1} parent=5 // pred_check
        _
      $region22: #{tpu_custom_call.1} parent=5 // pred_check_branch
        %93 = sbr.rel (%p90) target = $region24
      $region23: #{tpu_custom_call.1} parent=5 // pred_region
        %s94 = ssub.s32 %s11, 1
        // Predicated region
        $region25: #{tpu_custom_call.1} parent=23 // pred_check
          %p95 = pneg %p32
        $region26: #{tpu_custom_call.1} parent=23 // pred_check_branch
          %97 = sbr.rel (%p95) target = $region28
        $region27: #{tpu_custom_call.1} parent=23 // pred_region
          %98 = dma.done [#allocation3], 128
        $region28: #{tpu_custom_call.1} parent=23 // pred_fallthru
          _
        %p99 = pneg %p32
        %p100 = pneg %p29
        %p101 = pneg %p58
        %p102 = pneg %p55
        %s103 = sand.u32 %s45, 1
        %s104 = scalar_lea.sflag [#allocation4], %s103
        %s105 = sand.u32 %s45, 1
        %s106 = smul.addr %s105, 8
        %s107 = scalar_lea.vmem [#allocation5], %s106
        %v108 = vld [vmem:[#allocation2] sm:$0xff]
        %v109 = vadd.f32 %v108, 1.0
        %110 = vst [vmem:[%s107] sm:$0xff] %v109
        %s111 = sand.u32 %s45, 1
        %s112 = scalar_lea.sflag [#allocation4], %s111
        %s113 = sand.u32 %s45, 1
        %s114 = smul.addr %s113, 8
        %s115 = scalar_lea.vmem [#allocation5], %s114
        // Predicated region
        $region29: #{tpu_custom_call.1} parent=23 // pred_check
          %p116 = pneg %p55
        $region30: #{tpu_custom_call.1} parent=23 // pred_check_branch
          %118 = sbr.rel (%p116) target = $region32
        $region31: #{tpu_custom_call.1} parent=23 // pred_region
          %s120 = ssub.s32 128, 128
          %121 = vsyncadd %s112, %s120
          %s122 = smul.addr %s16, 128
          %s123 = scalar_lea.hbm %s1, %s122
          %s125 = sshll.u32 %s115, 4
          %s126 = int_to_ptr.vmem [resolvable:$true] %s125
          %128 = dma.vmem_to_hbm [thread:$0]  %s126, 128, %s123, %s112
        $region32: #{tpu_custom_call.1} parent=23 // pred_fallthru
          _
      $region24: #{tpu_custom_call.1} parent=5 // pred_fallthru
        _
      %p129 = scmp.le.s32.totalorder 2, %s11
      // Predicated region
      $region33: #{tpu_custom_call.1} parent=5 // pred_check
        %p130 = pneg %p129
      $region34: #{tpu_custom_call.1} parent=5 // pred_check_branch
        %132 = sbr.rel (%p130) target = $region36
      $region35: #{tpu_custom_call.1} parent=5 // pred_region
        %s133 = ssub.s32 %s11, 2
        // Predicated region
        $region37: #{tpu_custom_call.1} parent=35 // pred_check
          %p134 = pneg %p61
        $region38: #{tpu_custom_call.1} parent=35 // pred_check_branch
          %136 = sbr.rel (%p134) target = $region40
        $region39: #{tpu_custom_call.1} parent=35 // pred_region
          %s137 = sand.u32 %s46, 1
          %s138 = scalar_lea.sflag [#allocation4], %s137
          %s139 = sand.u32 %s46, 1
          %s140 = smul.addr %s139, 8
          %s141 = scalar_lea.vmem [#allocation5], %s140
          %142 = dma.done %s138, 128
        $region40: #{tpu_custom_call.1} parent=35 // pred_fallthru
          _
      $region36: #{tpu_custom_call.1} parent=5 // pred_fallthru
        _
    $region6: #{tpu_custom_call.1} parent=1 // loop_footer
      %s15 = sadd.s32 1, %s11
    $region7: #{tpu_custom_call.1} parent=1 // loop_footer_branch
      %10 = sbr.rel target = $region3
    $region8: #{tpu_custom_call.1} parent=1 // loop_exit
      _
    %143 = vsyncpa [#allocation3], 1
    %s144 = scalar_lea.sflag [#allocation3], 1
    %145 = vsyncpa %s144, 1
    %146 = vsyncpa [#allocation4], 1
    %s147 = scalar_lea.sflag [#allocation4], 1
    %148 = vsyncpa %s147, 1

// kernel: tpu_custom_call.1
$region0: #{tpu_custom_call.1}
  #allocation0 [shape = 'u32[]', space=smem, size = 0x4, offset = 0x4, fixed_abs, tag = 'smem constant byte address 0x4 - core index']
  #allocation1 [shape = 'u32[144,128]{1,0:T(1,128)}', space=vmem, size = 0x12000, scoped, tag = 'internal scratch']
  %s0 = inlined_call_operand.hbm [shape: bf16[2,16,16,32], index: 0, kind: input, shape index: {}]
  %s1 = inlined_call_operand.hbm [shape: bf16[32,64], index: 1, kind: input, shape index: {}]
  %s2 = inlined_call_operand.vmem [shape: f32[1,64], index: 2, kind: input, shape index: {}]
  %s3 = inlined_call_operand.vmem [shape: f32[1,64], index: 3, kind: input, shape index: {}]
  %s4 = inlined_call_operand.hbm [shape: bf16[2,16,16,64], index: 4, kind: output, shape index: {}]
  %s5 = sld [smem:[#allocation0]]
  $region57: #{tpu_custom_call.1} parent=0
    _
  %s7 = ssub.s32 1, %s5
  %s8 = scalar_select 0, %s7, %s5
  $region1: #{tpu_custom_call.1} parent=0
    #allocation2 [shape = 'u8[131072]{0}', space=vmem, size = 0x20000, scoped, tag = 'input window, operand 0']
    #allocation3 [shape = 's32[2]{0}', space=sflag, size = 0x8, scoped, tag = 'scoped memory for tpu_custom_call.1']
    #allocation4 [shape = 's32[2]{0}', space=sflag, size = 0x8, scoped, tag = 'scoped memory for tpu_custom_call.1']
    #allocation5 [shape = 'u8[8192]{0}', space=vmem, size = 0x2000, scoped, tag = 'input window, operand 1, single buffered']
    #allocation6 [shape = 's32[1]{0}', space=sflag, size = 0x4, scoped, tag = 'scoped memory for tpu_custom_call.1']
    #allocation7 [shape = 'u8[131072]{0}', space=vmem, size = 0x20000, scoped, tag = 'output window, operand 0']
    %9 = vsyncpa [#allocation3], 0
    %s10 = scalar_lea.sflag [#allocation3], 1
    %11 = vsyncpa %s10, 0
    %12 = vsyncpa [#allocation6], 0
    %13 = vsyncpa [#allocation4], 0
    %s14 = scalar_lea.sflag [#allocation4], 1
    %15 = vsyncpa %s14, 0
    loop: start=0, step=1, limit=4
    $region2: #{tpu_custom_call.1} parent=1 // loop_pre_header
      _
    $region3: #{tpu_custom_call.1} parent=1 // loop_header
      %s17 = sphi 0, %s21
      %p18 = scmp.ge.s32.totalorder %s17, 4
      %s27 = sphi 0, %s29
      %s30 = sphi 0, %s27
      %s31 = sphi 0, %s30
      %s47 = sphi 0, %s31
      %s51 = sphi 0, %s51
      %s53 = sphi 0, %s51
      %s54 = sphi 0, %s53
      %s68 = sphi 0, %s54
      %s72 = sphi 0, %s72
      %s74 = sphi 0, %s72
      %s75 = sphi 0, %s74
      %s89 = sphi 0, %s75
      %s93 = sphi 0, %s93
      %s95 = sphi 0, %s93
      %s96 = sphi 0, %s95
      %s110 = sphi 0, %s96
      %s116 = sphi 0, %s118
      %s119 = sphi 0, %s116
      %s120 = sphi 0, %s119
      %s136 = sphi 0, %s120
    $region4: #{tpu_custom_call.1} parent=1 // loop_header_branch
      %20 = sbr.rel (%p18) target = $region8
    $region5: #{tpu_custom_call.1} parent=1 // loop_body
      %s22 = ssub.s32 %s17, 1
      %s23 = ssub.s32 %s17, 2
      %s24 = sadd.s32 %s17, 1
      %s25 = ssub.s32 %s17, %s24
      %p26 = scmp.eq.s32.totalorder %s25, 0
      %s28 = sadd.s32 %s27, 1
      %s29 = scalar_select %p26, %s27, %s28
      %p32 = pneg %p26
      %p33 = scmp.eq.s32.totalorder %s17, 1
      %p34 = por %p32, %p33
      %p35 = scmp.ne.s32.totalorder %s27, %s30
      %p36 = scmp.eq.s32.totalorder %s17, 0
      %p37 = por %p35, %p36
      %p38 = scmp.ne.s32.totalorder %s27, %s30
      %p39 = scmp.eq.s32.totalorder %s22, 1
      %p40 = por %p38, %p39
      %p41 = scmp.ne.s32.totalorder %s30, %s31
      %p42 = scmp.eq.s32.totalorder %s22, 0
      %p43 = por %p41, %p42
      %p44 = scmp.ne.s32.totalorder %s30, %s31
      %p45 = scmp.eq.s32.totalorder %s23, 1
      %p46 = por %p44, %p45
      %p48 = scmp.ne.s32.totalorder %s31, %s47
      %p49 = scmp.eq.s32.totalorder %s23, 0
      %p50 = por %p48, %p49
      %s52 = sadd.s32 %s51, 1
      %p55 = scmp.eq.s32.totalorder %s17, 1
      %p56 = scmp.ne.s32.totalorder %s51, %s53
      %p57 = scmp.eq.s32.totalorder %s17, 0
      %p58 = por %p56, %p57
      %p59 = scmp.ne.s32.totalorder %s51, %s53
      %p60 = scmp.eq.s32.totalorder %s22, 1
      %p61 = por %p59, %p60
      %p62 = scmp.ne.s32.totalorder %s53, %s54
      %p63 = scmp.eq.s32.totalorder %s22, 0
      %p64 = por %p62, %p63
      %p65 = scmp.ne.s32.totalorder %s53, %s54
      %p66 = scmp.eq.s32.totalorder %s23, 1
      %p67 = por %p65, %p66
      %p69 = scmp.ne.s32.totalorder %s54, %s68
      %p70 = scmp.eq.s32.totalorder %s23, 0
      %p71 = por %p69, %p70
      %s73 = sadd.s32 %s72, 1
      %p76 = scmp.eq.s32.totalorder %s17, 1
      %p77 = scmp.ne.s32.totalorder %s72, %s74
      %p78 = scmp.eq.s32.totalorder %s17, 0
      %p79 = por %p77, %p78
      %p80 = scmp.ne.s32.totalorder %s72, %s74
      %p81 = scmp.eq.s32.totalorder %s22, 1
      %p82 = por %p80, %p81
      %p83 = scmp.ne.s32.totalorder %s74, %s75
      %p84 = scmp.eq.s32.totalorder %s22, 0
      %p85 = por %p83, %p84
      %p86 = scmp.ne.s32.totalorder %s74, %s75
      %p87 = scmp.eq.s32.totalorder %s23, 1
      %p88 = por %p86, %p87
      %p90 = scmp.ne.s32.totalorder %s75, %s89
      %p91 = scmp.eq.s32.totalorder %s23, 0
      %p92 = por %p90, %p91
      %s94 = sadd.s32 %s93, 1
      %p97 = scmp.eq.s32.totalorder %s17, 1
      %p98 = scmp.ne.s32.totalorder %s93, %s95
      %p99 = scmp.eq.s32.totalorder %s17, 0
      %p100 = por %p98, %p99
      %p101 = scmp.ne.s32.totalorder %s93, %s95
      %p102 = scmp.eq.s32.totalorder %s22, 1
      %p103 = por %p101, %p102
      %p104 = scmp.ne.s32.totalorder %s95, %s96
      %p105 = scmp.eq.s32.totalorder %s22, 0
      %p106 = por %p104, %p105
      %p107 = scmp.ne.s32.totalorder %s95, %s96
      %p108 = scmp.eq.s32.totalorder %s23, 1
      %p109 = por %p107, %p108
      %p111 = scmp.ne.s32.totalorder %s96, %s110
      %p112 = scmp.eq.s32.totalorder %s23, 0
      %p113 = por %p111, %p112
      %s114 = ssub.s32 %s17, %s24
      %p115 = scmp.eq.s32.totalorder %s114, 0
      %s117 = sadd.s32 %s116, 1
      %s118 = scalar_select %p115, %s116, %s117
      %p121 = pneg %p115
      %p122 = scmp.eq.s32.totalorder %s17, 1
      %p123 = por %p121, %p122
      %p124 = scmp.ne.s32.totalorder %s116, %s119
      %p125 = scmp.eq.s32.totalorder %s17, 0
      %p126 = por %p124, %p125
      %p127 = scmp.ne.s32.totalorder %s116, %s119
      %p128 = scmp.eq.s32.totalorder %s22, 1
      %p129 = por %p127, %p128
      %p130 = scmp.ne.s32.totalorder %s119, %s120
      %p131 = scmp.eq.s32.totalorder %s22, 0
      %p132 = por %p130, %p131
      %p133 = scmp.ne.s32.totalorder %s119, %s120
      %p134 = scmp.eq.s32.totalorder %s23, 1
      %p135 = por %p133, %p134
      %p137 = scmp.ne.s32.totalorder %s120, %s136
      %p138 = scmp.eq.s32.totalorder %s23, 0
      %p139 = por %p137, %p138
      %p140 = scmp.le.s32.totalorder 1, %s17
      %p141 = scmp.lt.s32.totalorder %s17, 3
      %p142 = pnand %p140, %p141
      %p143 = pneg %p142
      // Predicated region
      $region9: #{tpu_custom_call.1} parent=5 // pred_check
        _
      $region10: #{tpu_custom_call.1} parent=5 // pred_check_branch
        %145 = sbr.rel (%p142) target = $region12
      $region11: #{tpu_custom_call.1} parent=5 // pred_region
        %s146 = ssub.s32 %s17, 1
        // Predicated region
        $region13: #{tpu_custom_call.1} parent=11 // pred_check
          %p147 = pneg %p64
        $region14: #{tpu_custom_call.1} parent=11 // pred_check_branch
          %149 = sbr.rel (%p147) target = $region16
        $region15: #{tpu_custom_call.1} parent=11 // pred_region
          %s151 = ssub.s32 256, 256
          %152 = vsyncadd [#allocation6], %s151
          %s153 = sshll.u32 [#allocation5], 4
          %s154 = int_to_ptr.vmem [resolvable:$true] %s153
          %159 = dma.hbm_to_vmem [thread:$0]  %s1, 256, %s154, [#allocation6], 64, 64, 4
        $region16: #{tpu_custom_call.1} parent=11 // pred_fallthru
          _
        // Predicated region
        $region17: #{tpu_custom_call.1} parent=11 // pred_check
          %p160 = pneg %p85
        $region18: #{tpu_custom_call.1} parent=11 // pred_check_branch
          %162 = sbr.rel (%p160) target = $region20
        $region19: #{tpu_custom_call.1} parent=11 // pred_region
          _
        $region20: #{tpu_custom_call.1} parent=11 // pred_fallthru
          _
        // Predicated region
        $region21: #{tpu_custom_call.1} parent=11 // pred_check
          %p163 = pneg %p106
        $region22: #{tpu_custom_call.1} parent=11 // pred_check_branch
          %165 = sbr.rel (%p163) target = $region24
        $region23: #{tpu_custom_call.1} parent=11 // pred_region
          _
        $region24: #{tpu_custom_call.1} parent=11 // pred_fallthru
          _
      $region12: #{tpu_custom_call.1} parent=5 // pred_fallthru
        _
      %p166 = scmp.lt.s32.totalorder %s17, 2
      // Predicated region
      $region25: #{tpu_custom_call.1} parent=5 // pred_check
        %p167 = pneg %p166
      $region26: #{tpu_custom_call.1} parent=5 // pred_check_branch
        %169 = sbr.rel (%p167) target = $region28
      $region27: #{tpu_custom_call.1} parent=5 // pred_region
        // Predicated region
        $region29: #{tpu_custom_call.1} parent=27 // pred_check
          %p170 = pneg %p37
        $region30: #{tpu_custom_call.1} parent=27 // pred_check_branch
          %172 = sbr.rel (%p170) target = $region32
        $region31: #{tpu_custom_call.1} parent=27 // pred_region
          %s173 = sand.u32 %s27, 1
          %s174 = scalar_lea.sflag [#allocation3], %s173
          %s175 = sand.u32 %s27, 1
          %s176 = smul.addr %s175, 128
          %s177 = scalar_lea.vmem [#allocation2], %s176
          %s179 = ssub.s32 2048, 2048
          %180 = vsyncadd %s174, %s179
          %s181 = smul.addr %s17, 32
          %s182 = smul.addr %s181, 64
          %s183 = scalar_lea.hbm %s0, %s182
          %s184 = sshll.u32 %s177, 4
          %s185 = int_to_ptr.vmem [resolvable:$true] %s184
          %190 = dma.hbm_to_vmem [thread:$0]  %s183, 2048, %s185, %s174, 64, 64, 4
        $region32: #{tpu_custom_call.1} parent=27 // pred_fallthru
          _
      $region28: #{tpu_custom_call.1} parent=5 // pred_fallthru
        _
      %p191 = scmp.le.s32.totalorder 1, %s17
      %p192 = scmp.lt.s32.totalorder %s17, 3
      %p193 = pnand %p191, %p192
      %p194 = pneg %p193
      // Predicated region
      $region33: #{tpu_custom_call.1} parent=5 // pred_check
        _
      $region34: #{tpu_custom_call.1} parent=5 // pred_check_branch
        %196 = sbr.rel (%p193) target = $region36
      $region35: #{tpu_custom_call.1} parent=5 // pred_region
        %s197 = ssub.s32 %s17, 1
        %s198 = sand.u32 %s30, 1
        %s199 = scalar_lea.sflag [#allocation3], %s198
        %s200 = sand.u32 %s30, 1
        %s201 = smul.addr %s200, 128
        %s202 = scalar_lea.vmem [#allocation2], %s201
        // Predicated region
        $region37: #{tpu_custom_call.1} parent=35 // pred_check
          %p203 = pneg %p43
        $region38: #{tpu_custom_call.1} parent=35 // pred_check_branch
          %205 = sbr.rel (%p203) target = $region40
        $region39: #{tpu_custom_call.1} parent=35 // pred_region
          %206 = dma.done %s199, 2048
        $region40: #{tpu_custom_call.1} parent=35 // pred_fallthru
          _
        // Predicated region
        $region41: #{tpu_custom_call.1} parent=35 // pred_check
          %p207 = pneg %p64
        $region42: #{tpu_custom_call.1} parent=35 // pred_check_branch
          %209 = sbr.rel (%p207) target = $region44
        $region43: #{tpu_custom_call.1} parent=35 // pred_region
          %210 = dma.done [#allocation6], 256
        $region44: #{tpu_custom_call.1} parent=35 // pred_fallthru
          _
        %s211 = sand.u32 %s30, 1
        %s212 = scalar_lea.sflag [#allocation3], %s211
        %s213 = sand.u32 %s30, 1
        %s214 = smul.addr %s213, 128
        %s215 = scalar_lea.vmem [#allocation2], %s214
        %p216 = pneg %p43
        %p217 = pneg %p40
        %p218 = pneg %p64
        %p219 = pneg %p61
        %p220 = pneg %p85
        %p221 = pneg %p82
        %p222 = pneg %p106
        %p223 = pneg %p103
        %p224 = pneg %p132
        %p225 = pneg %p129
        %s226 = sand.u32 %s119, 1
        %s227 = scalar_lea.sflag [#allocation4], %s226
        %s228 = sand.u32 %s119, 1
        %s229 = smul.addr %s228, 128
        %s230 = scalar_lea.vmem [#allocation7], %s229
        %v232 = vld [vmem:[%s202] sm:$0xf]
        %v233 = vld [vmem:[%s202 + $0x4] sm:$0xf]
        %v234 = vld [vmem:[%s202 + $0x8] sm:$0xf]
        %v235 = vld [vmem:[%s202 + $0xc] sm:$0xf]
        %v236 = vld [vmem:[%s202 + $0x10] sm:$0xf]
        %v237 = vld [vmem:[%s202 + $0x14] sm:$0xf]
        %v238 = vld [vmem:[%s202 + $0x18] sm:$0xf]
        %v239 = vld [vmem:[%s202 + $0x1c] sm:$0xf]
        %v240 = vld [vmem:[%s202 + $0x20] sm:$0xf]
        %v241 = vld [vmem:[%s202 + $0x24] sm:$0xf]
        %v242 = vld [vmem:[%s202 + $0x28] sm:$0xf]
        %v243 = vld [vmem:[%s202 + $0x2c] sm:$0xf]
        %v244 = vld [vmem:[%s202 + $0x30] sm:$0xf]
        %v245 = vld [vmem:[%s202 + $0x34] sm:$0xf]
        %v246 = vld [vmem:[%s202 + $0x38] sm:$0xf]
        %v247 = vld [vmem:[%s202 + $0x3c] sm:$0xf]
        %v248 = vld [vmem:[%s202 + $0x40] sm:$0xf]
        %v249 = vld [vmem:[%s202 + $0x44] sm:$0xf]
        %v250 = vld [vmem:[%s202 + $0x48] sm:$0xf]
        %v251 = vld [vmem:[%s202 + $0x4c] sm:$0xf]
        %v252 = vld [vmem:[%s202 + $0x50] sm:$0xf]
        %v253 = vld [vmem:[%s202 + $0x54] sm:$0xf]
        %v254 = vld [vmem:[%s202 + $0x58] sm:$0xf]
        %v255 = vld [vmem:[%s202 + $0x5c] sm:$0xf]
        %v256 = vld [vmem:[%s202 + $0x60] sm:$0xf]
        %v257 = vld [vmem:[%s202 + $0x64] sm:$0xf]
        %v258 = vld [vmem:[%s202 + $0x68] sm:$0xf]
        %v259 = vld [vmem:[%s202 + $0x6c] sm:$0xf]
        %v260 = vld [vmem:[%s202 + $0x70] sm:$0xf]
        %v261 = vld [vmem:[%s202 + $0x74] sm:$0xf]
        %v262 = vld [vmem:[%s202 + $0x78] sm:$0xf]
        %v263 = vld [vmem:[%s202 + $0x7c] sm:$0xf]
        %v264 = vld [vmem:[#allocation5] sm:$0xf]
        %v265 = vld [vmem:[#allocation5 + $0x4] sm:$0xf]
        %v266 = vld [vmem:[#allocation5 + $0x8] sm:$0xf]
        %v267 = vld [vmem:[#allocation5 + $0xc] sm:$0xf]
        %v300 = vunpack.c.l.b16 %v232
        %v301 = vunpack.c.l.b16 %v233
        %v302 = vunpack.c.l.b16 %v234
        %v303 = vunpack.c.l.b16 %v235
        %v304 = vunpack.c.l.b16 %v236
        %v305 = vunpack.c.l.b16 %v237
        %v306 = vunpack.c.l.b16 %v238
        %v307 = vunpack.c.l.b16 %v239
        %v308 = vunpack.c.l.b16 %v240
        %v309 = vunpack.c.l.b16 %v241
        %v310 = vunpack.c.l.b16 %v242
        %v311 = vunpack.c.l.b16 %v243
        %v312 = vunpack.c.l.b16 %v244
        %v313 = vunpack.c.l.b16 %v245
        %v314 = vunpack.c.l.b16 %v246
        %v315 = vunpack.c.l.b16 %v247
        %v316 = vunpack.c.l.b16 %v248
        %v317 = vunpack.c.l.b16 %v249
        %v318 = vunpack.c.l.b16 %v250
        %v319 = vunpack.c.l.b16 %v251
        %v320 = vunpack.c.l.b16 %v252
        %v321 = vunpack.c.l.b16 %v253
        %v322 = vunpack.c.l.b16 %v254
        %v323 = vunpack.c.l.b16 %v255
        %v324 = vunpack.c.l.b16 %v256
        %v325 = vunpack.c.l.b16 %v257
        %v326 = vunpack.c.l.b16 %v258
        %v327 = vunpack.c.l.b16 %v259
        %v328 = vunpack.c.l.b16 %v260
        %v329 = vunpack.c.l.b16 %v261
        %v330 = vunpack.c.l.b16 %v262
        %v331 = vunpack.c.l.b16 %v263
        %v332 = vpack.c.b16 %v301, %v300
        %v333 = vpack.c.b16 %v303, %v302
        %v334 = vpack.c.b16 %v305, %v304
        %v335 = vpack.c.b16 %v307, %v306
        %v336 = vpack.c.b16 %v309, %v308
        %v337 = vpack.c.b16 %v311, %v310
        %v338 = vpack.c.b16 %v313, %v312
        %v339 = vpack.c.b16 %v315, %v314
        %v340 = vpack.c.b16 %v317, %v316
        %v341 = vpack.c.b16 %v319, %v318
        %v342 = vpack.c.b16 %v321, %v320
        %v343 = vpack.c.b16 %v323, %v322
        %v344 = vpack.c.b16 %v325, %v324
        %v345 = vpack.c.b16 %v327, %v326
        %v346 = vpack.c.b16 %v329, %v328
        %v347 = vpack.c.b16 %v331, %v330
        %v352 = vunpack.c.l.b16 %v264
        %v353 = vunpack.c.l.b16 %v265
        %v354 = vunpack.c.l.b16 %v266
        %v355 = vunpack.c.l.b16 %v267
        %v356 = vpack.c.b16 %v353, %v352
        %v357 = vpack.c.b16 %v355, %v354
        %vm360 = vcmask 261120
        %v362 = vsel %vm360, %v332, 0
        %v365 = vsel %vm360, %v333, 0
        %v368 = vsel %vm360, %v334, 0
        %v371 = vsel %vm360, %v335, 0
        %v374 = vsel %vm360, %v336, 0
        %v377 = vsel %vm360, %v337, 0
        %v380 = vsel %vm360, %v338, 0
        %v383 = vsel %vm360, %v339, 0
        %v386 = vsel %vm360, %v340, 0
        %v389 = vsel %vm360, %v341, 0
        %v392 = vsel %vm360, %v342, 0
        %v395 = vsel %vm360, %v343, 0
        %v398 = vsel %vm360, %v344, 0
        %v401 = vsel %vm360, %v345, 0
        %v404 = vsel %vm360, %v346, 0
        %v407 = vsel %vm360, %v347, 0
        %409 = vmatprep.subr.bf16.mxu0 0
        %410 = vmatpush1.bf16.msra.mxu0 0
        %411 = vmatprep.subr.bf16.mxu0 0
        %412 = vmatpush1.bf16.msra.mxu0 0
        %413 = vmatprep.subr.bf16.mxu0 0
        %414 = vmatpush1.bf16.msra.mxu0 0
        %415 = vmatprep.subr.bf16.mxu0 0
        %416 = vmatpush1.bf16.msra.mxu0 0
        %417 = vmatprep.subr.bf16.mxu0 0
        %418 = vmatpush1.bf16.msra.mxu0 0
        %419 = vmatprep.subr.bf16.mxu0 0
        %420 = vmatpush1.bf16.msra.mxu0 0
        %421 = vmatprep.subr.bf16.mxu0 0
        %422 = vmatpush1.bf16.msra.mxu0 %v357
        %423 = vmatprep.subr.bf16.mxu0 0
        %424 = vmatpush1.bf16.msra.mxu0 %v356
        %425 = vmatprep.subr.bf16.mxu0 0
        %426 = vmatpush2.bf16.msra.mxu0 0
        %427 = vmatprep.subr.bf16.mxu0 0
        %428 = vmatpush2.bf16.msra.mxu0 0
        %429 = vmatprep.subr.bf16.mxu0 0
        %430 = vmatpush2.bf16.msra.mxu0 0
        %431 = vmatprep.subr.bf16.mxu0 0
        %432 = vmatpush2.bf16.msra.mxu0 0
        %433 = vmatprep.subr.bf16.mxu0 0
        %434 = vmatpush2.bf16.msra.mxu0 0
        %435 = vmatprep.subr.bf16.mxu0 0
        %436 = vmatpush2.bf16.msra.mxu0 0
        %437 = vmatprep.subr.bf16.mxu0 0
        %438 = vmatpush2.bf16.msra.mxu0 0
        %439 = vmatprep.subr.bf16.mxu0 0
        %440 = vmatpush2.bf16.msra.mxu0 0
        %441 = vmatprep.mubr.bf16.mxu0 0
        %442 = vmatmul.mubr.bf16.gmra.mxu0 %v362
        %v443 = vpop.f32.mrf.mxu0
        %v444 = vadd.f32 0.0, %v443
        %v445 = vpop.f32.mrf.mxu0
        %v446 = vpop.f32.mrf.mxu0
        %v447 = vadd.f32 0.0, %v446
        %v448 = vpop.f32.mrf.mxu0
        %449 = vmatprep.mubr.bf16.mxu0 0
        %450 = vmatmul.mubr.bf16.gmra.mxu0 %v365
        %v451 = vpop.f32.mrf.mxu0
        %v452 = vadd.f32 0.0, %v451
        %v453 = vpop.f32.mrf.mxu0
        %v454 = vpop.f32.mrf.mxu0
        %v455 = vadd.f32 0.0, %v454
        %v456 = vpop.f32.mrf.mxu0
        %457 = vmatprep.mubr.bf16.mxu0 0
        %458 = vmatmul.mubr.bf16.gmra.mxu0 %v368
        %v459 = vpop.f32.mrf.mxu0
        %v460 = vadd.f32 0.0, %v459
        %v461 = vpop.f32.mrf.mxu0
        %v462 = vpop.f32.mrf.mxu0
        %v463 = vadd.f32 0.0, %v462
        %v464 = vpop.f32.mrf.mxu0
        %465 = vmatprep.mubr.bf16.mxu0 0
        %466 = vmatmul.mubr.bf16.gmra.mxu0 %v371
        %v467 = vpop.f32.mrf.mxu0
        %v468 = vadd.f32 0.0, %v467
        %v469 = vpop.f32.mrf.mxu0
        %v470 = vpop.f32.mrf.mxu0
        %v471 = vadd.f32 0.0, %v470
        %v472 = vpop.f32.mrf.mxu0
        %473 = vmatprep.mubr.bf16.mxu0 0
        %474 = vmatmul.mubr.bf16.gmra.mxu0 %v374
        %v475 = vpop.f32.mrf.mxu0
        %v476 = vadd.f32 0.0, %v475
        %v477 = vpop.f32.mrf.mxu0
        %v478 = vpop.f32.mrf.mxu0
        %v479 = vadd.f32 0.0, %v478
        %v480 = vpop.f32.mrf.mxu0
        %481 = vmatprep.mubr.bf16.mxu0 0
        %482 = vmatmul.mubr.bf16.gmra.mxu0 %v377
        %v483 = vpop.f32.mrf.mxu0
        %v484 = vadd.f32 0.0, %v483
        %v485 = vpop.f32.mrf.mxu0
        %v486 = vpop.f32.mrf.mxu0
        %v487 = vadd.f32 0.0, %v486
        %v488 = vpop.f32.mrf.mxu0
        %489 = vmatprep.mubr.bf16.mxu0 0
        %490 = vmatmul.mubr.bf16.gmra.mxu0 %v380
        %v491 = vpop.f32.mrf.mxu0
        %v492 = vadd.f32 0.0, %v491
        %v493 = vpop.f32.mrf.mxu0
        %v494 = vpop.f32.mrf.mxu0
        %v495 = vadd.f32 0.0, %v494
        %v496 = vpop.f32.mrf.mxu0
        %497 = vmatprep.mubr.bf16.mxu0 0
        %498 = vmatmul.mubr.bf16.gmra.mxu0 %v383
        %v499 = vpop.f32.mrf.mxu0
        %v500 = vadd.f32 0.0, %v499
        %v501 = vpop.f32.mrf.mxu0
        %v502 = vpop.f32.mrf.mxu0
        %v503 = vadd.f32 0.0, %v502
        %v504 = vpop.f32.mrf.mxu0
        %505 = vmatprep.mubr.bf16.mxu0 0
        %506 = vmatmul.mubr.bf16.gmra.mxu0 %v386
        %v507 = vpop.f32.mrf.mxu0
        %v508 = vadd.f32 0.0, %v507
        %v509 = vpop.f32.mrf.mxu0
        %v510 = vpop.f32.mrf.mxu0
        %v511 = vadd.f32 0.0, %v510
        %v512 = vpop.f32.mrf.mxu0
        %513 = vmatprep.mubr.bf16.mxu0 0
        %514 = vmatmul.mubr.bf16.gmra.mxu0 %v389
        %v515 = vpop.f32.mrf.mxu0
        %v516 = vadd.f32 0.0, %v515
        %v517 = vpop.f32.mrf.mxu0
        %v518 = vpop.f32.mrf.mxu0
        %v519 = vadd.f32 0.0, %v518
        %v520 = vpop.f32.mrf.mxu0
        %521 = vmatprep.mubr.bf16.mxu0 0
        %522 = vmatmul.mubr.bf16.gmra.mxu0 %v392
        %v523 = vpop.f32.mrf.mxu0
        %v524 = vadd.f32 0.0, %v523
        %v525 = vpop.f32.mrf.mxu0
        %v526 = vpop.f32.mrf.mxu0
        %v527 = vadd.f32 0.0, %v526
        %v528 = vpop.f32.mrf.mxu0
        %529 = vmatprep.mubr.bf16.mxu0 0
        %530 = vmatmul.mubr.bf16.gmra.mxu0 %v395
        %v531 = vpop.f32.mrf.mxu0
        %v532 = vadd.f32 0.0, %v531
        %v533 = vpop.f32.mrf.mxu0
        %v534 = vpop.f32.mrf.mxu0
        %v535 = vadd.f32 0.0, %v534
        %v536 = vpop.f32.mrf.mxu0
        %537 = vmatprep.mubr.bf16.mxu0 0
        %538 = vmatmul.mubr.bf16.gmra.mxu0 %v398
        %v539 = vpop.f32.mrf.mxu0
        %v540 = vadd.f32 0.0, %v539
        %v541 = vpop.f32.mrf.mxu0
        %v542 = vpop.f32.mrf.mxu0
        %v543 = vadd.f32 0.0, %v542
        %v544 = vpop.f32.mrf.mxu0
        %545 = vmatprep.mubr.bf16.mxu0 0
        %546 = vmatmul.mubr.bf16.gmra.mxu0 %v401
        %v547 = vpop.f32.mrf.mxu0
        %v548 = vadd.f32 0.0, %v547
        %v549 = vpop.f32.mrf.mxu0
        %v550 = vpop.f32.mrf.mxu0
        %v551 = vadd.f32 0.0, %v550
        %v552 = vpop.f32.mrf.mxu0
        %553 = vmatprep.mubr.bf16.mxu0 0
        %554 = vmatmul.mubr.bf16.gmra.mxu0 %v404
        %v555 = vpop.f32.mrf.mxu0
        %v556 = vadd.f32 0.0, %v555
        %v557 = vpop.f32.mrf.mxu0
        %v558 = vpop.f32.mrf.mxu0
        %v559 = vadd.f32 0.0, %v558
        %v560 = vpop.f32.mrf.mxu0
        %561 = vmatprep.mubr.bf16.mxu0 0
        %562 = vmatmul.mubr.bf16.gmra.mxu0 %v407
        %v563 = vpop.f32.mrf.mxu0
        %v564 = vadd.f32 0.0, %v563
        %v565 = vpop.f32.mrf.mxu0
        %v566 = vpop.f32.mrf.mxu0
        %v567 = vadd.f32 0.0, %v566
        %v568 = vpop.f32.mrf.mxu0
        %569 = vdwg.mxu0
        %v570 = vld [vmem:[%s2] sm:$0x1]
        %v572 = vlaneseq
        %v573 = vshrl.u32 %v572, 7
        %v574 = vsub.s32 0, %v573
        %v575 = vrot.slane %v570, %v574
        %v577 = vmul.f32 %v444, %v575
        %v578 = vmul.f32 %v447, %v575
        %v579 = vmul.f32 %v452, %v575
        %v580 = vmul.f32 %v455, %v575
        %v581 = vmul.f32 %v460, %v575
        %v582 = vmul.f32 %v463, %v575
        %v583 = vmul.f32 %v468, %v575
        %v584 = vmul.f32 %v471, %v575
        %v585 = vmul.f32 %v476, %v575
        %v586 = vmul.f32 %v479, %v575
        %v587 = vmul.f32 %v484, %v575
        %v588 = vmul.f32 %v487, %v575
        %v589 = vmul.f32 %v492, %v575
        %v590 = vmul.f32 %v495, %v575
        %v591 = vmul.f32 %v500, %v575
        %v592 = vmul.f32 %v503, %v575
        %v593 = vmul.f32 %v508, %v575
        %v594 = vmul.f32 %v511, %v575
        %v595 = vmul.f32 %v516, %v575
        %v596 = vmul.f32 %v519, %v575
        %v597 = vmul.f32 %v524, %v575
        %v598 = vmul.f32 %v527, %v575
        %v599 = vmul.f32 %v532, %v575
        %v600 = vmul.f32 %v535, %v575
        %v601 = vmul.f32 %v540, %v575
        %v602 = vmul.f32 %v543, %v575
        %v603 = vmul.f32 %v548, %v575
        %v604 = vmul.f32 %v551, %v575
        %v605 = vmul.f32 %v556, %v575
        %v606 = vmul.f32 %v559, %v575
        %v607 = vmul.f32 %v564, %v575
        %v608 = vmul.f32 %v567, %v575
        %v609 = vld [vmem:[%s3] sm:$0x1]
        %v611 = vlaneseq
        %v612 = vshrl.u32 %v611, 7
        %v613 = vsub.s32 0, %v612
        %v614 = vrot.slane %v609, %v613
        %v616 = vadd.f32 %v577, %v614
        %v617 = vadd.f32 %v578, %v614
        %v618 = vadd.f32 %v579, %v614
        %v619 = vadd.f32 %v580, %v614
        %v620 = vadd.f32 %v581, %v614
        %v621 = vadd.f32 %v582, %v614
        %v622 = vadd.f32 %v583, %v614
        %v623 = vadd.f32 %v584, %v614
        %v624 = vadd.f32 %v585, %v614
        %v625 = vadd.f32 %v586, %v614
        %v626 = vadd.f32 %v587, %v614
        %v627 = vadd.f32 %v588, %v614
        %v628 = vadd.f32 %v589, %v614
        %v629 = vadd.f32 %v590, %v614
        %v630 = vadd.f32 %v591, %v614
        %v631 = vadd.f32 %v592, %v614
        %v632 = vadd.f32 %v593, %v614
        %v633 = vadd.f32 %v594, %v614
        %v634 = vadd.f32 %v595, %v614
        %v635 = vadd.f32 %v596, %v614
        %v636 = vadd.f32 %v597, %v614
        %v637 = vadd.f32 %v598, %v614
        %v638 = vadd.f32 %v599, %v614
        %v639 = vadd.f32 %v600, %v614
        %v640 = vadd.f32 %v601, %v614
        %v641 = vadd.f32 %v602, %v614
        %v642 = vadd.f32 %v603, %v614
        %v643 = vadd.f32 %v604, %v614
        %v644 = vadd.f32 %v605, %v614
        %v645 = vadd.f32 %v606, %v614
        %v646 = vadd.f32 %v607, %v614
        %v647 = vadd.f32 %v608, %v614
        %v648 = vmax.f32 %v616, 0.0
        %v649 = vmax.f32 %v617, 0.0
        %v650 = vmax.f32 %v618, 0.0
        %v651 = vmax.f32 %v619, 0.0
        %v652 = vmax.f32 %v620, 0.0
        %v653 = vmax.f32 %v621, 0.0
        %v654 = vmax.f32 %v622, 0.0
        %v655 = vmax.f32 %v623, 0.0
        %v656 = vmax.f32 %v624, 0.0
        %v657 = vmax.f32 %v625, 0.0
        %v658 = vmax.f32 %v626, 0.0
        %v659 = vmax.f32 %v627, 0.0
        %v660 = vmax.f32 %v628, 0.0
        %v661 = vmax.f32 %v629, 0.0
        %v662 = vmax.f32 %v630, 0.0
        %v663 = vmax.f32 %v631, 0.0
        %v664 = vmax.f32 %v632, 0.0
        %v665 = vmax.f32 %v633, 0.0
        %v666 = vmax.f32 %v634, 0.0
        %v667 = vmax.f32 %v635, 0.0
        %v668 = vmax.f32 %v636, 0.0
        %v669 = vmax.f32 %v637, 0.0
        %v670 = vmax.f32 %v638, 0.0
        %v671 = vmax.f32 %v639, 0.0
        %v672 = vmax.f32 %v640, 0.0
        %v673 = vmax.f32 %v641, 0.0
        %v674 = vmax.f32 %v642, 0.0
        %v675 = vmax.f32 %v643, 0.0
        %v676 = vmax.f32 %v644, 0.0
        %v677 = vmax.f32 %v645, 0.0
        %v678 = vmax.f32 %v646, 0.0
        %v679 = vmax.f32 %v647, 0.0
        %v680 = vpack.c.bf16 %v649, %v648
        %v681 = vpack.c.bf16 %v651, %v650
        %v682 = vpack.c.bf16 %v653, %v652
        %v683 = vpack.c.bf16 %v655, %v654
        %v684 = vpack.c.bf16 %v657, %v656
        %v685 = vpack.c.bf16 %v659, %v658
        %v686 = vpack.c.bf16 %v661, %v660
        %v687 = vpack.c.bf16 %v663, %v662
        %v688 = vpack.c.bf16 %v665, %v664
        %v689 = vpack.c.bf16 %v667, %v666
        %v690 = vpack.c.bf16 %v669, %v668
        %v691 = vpack.c.bf16 %v671, %v670
        %v692 = vpack.c.bf16 %v673, %v672
        %v693 = vpack.c.bf16 %v675, %v674
        %v694 = vpack.c.bf16 %v677, %v676
        %v695 = vpack.c.bf16 %v679, %v678
        %v712 = vunpack.c.l.b16 %v680
        %v713 = vunpack.c.h.b16 %v680
        %v714 = vunpack.c.l.b16 %v681
        %v715 = vunpack.c.h.b16 %v681
        %v716 = vunpack.c.l.b16 %v682
        %v717 = vunpack.c.h.b16 %v682
        %v718 = vunpack.c.l.b16 %v683
        %v719 = vunpack.c.h.b16 %v683
        %v720 = vunpack.c.l.b16 %v684
        %v721 = vunpack.c.h.b16 %v684
        %v722 = vunpack.c.l.b16 %v685
        %v723 = vunpack.c.h.b16 %v685
        %v724 = vunpack.c.l.b16 %v686
        %v725 = vunpack.c.h.b16 %v686
        %v726 = vunpack.c.l.b16 %v687
        %v727 = vunpack.c.h.b16 %v687
        %v728 = vunpack.c.l.b16 %v688
        %v729 = vunpack.c.h.b16 %v688
        %v730 = vunpack.c.l.b16 %v689
        %v731 = vunpack.c.h.b16 %v689
        %v732 = vunpack.c.l.b16 %v690
        %v733 = vunpack.c.h.b16 %v690
        %v734 = vunpack.c.l.b16 %v691
        %v735 = vunpack.c.h.b16 %v691
        %v736 = vunpack.c.l.b16 %v692
        %v737 = vunpack.c.h.b16 %v692
        %v738 = vunpack.c.l.b16 %v693
        %v739 = vunpack.c.h.b16 %v693
        %v740 = vunpack.c.l.b16 %v694
        %v741 = vunpack.c.h.b16 %v694
        %v742 = vunpack.c.l.b16 %v695
        %v743 = vunpack.c.h.b16 %v695
        %v744 = vpack.c.b16 %v712, %v712
        %v745 = vpack.c.b16 %v713, %v713
        %v746 = vpack.c.b16 %v714, %v714
        %v747 = vpack.c.b16 %v715, %v715
        %v748 = vpack.c.b16 %v716, %v716
        %v749 = vpack.c.b16 %v717, %v717
        %v750 = vpack.c.b16 %v718, %v718
        %v751 = vpack.c.b16 %v719, %v719
        %v752 = vpack.c.b16 %v720, %v720
        %v753 = vpack.c.b16 %v721, %v721
        %v754 = vpack.c.b16 %v722, %v722
        %v755 = vpack.c.b16 %v723, %v723
        %v756 = vpack.c.b16 %v724, %v724
        %v757 = vpack.c.b16 %v725, %v725
        %v758 = vpack.c.b16 %v726, %v726
        %v759 = vpack.c.b16 %v727, %v727
        %v760 = vpack.c.b16 %v728, %v728
        %v761 = vpack.c.b16 %v729, %v729
        %v762 = vpack.c.b16 %v730, %v730
        %v763 = vpack.c.b16 %v731, %v731
        %v764 = vpack.c.b16 %v732, %v732
        %v765 = vpack.c.b16 %v733, %v733
        %v766 = vpack.c.b16 %v734, %v734
        %v767 = vpack.c.b16 %v735, %v735
        %v768 = vpack.c.b16 %v736, %v736
        %v769 = vpack.c.b16 %v737, %v737
        %v770 = vpack.c.b16 %v738, %v738
        %v771 = vpack.c.b16 %v739, %v739
        %v772 = vpack.c.b16 %v740, %v740
        %v773 = vpack.c.b16 %v741, %v741
        %v774 = vpack.c.b16 %v742, %v742
        %v775 = vpack.c.b16 %v743, %v743
        %vm808 = vcmask 519168
        %809 = vst.msk [vmem:[%s230] sm:$0xf] %vm808, %v744
        %810 = vst.msk [vmem:[%s230 + $0x4] sm:$0xf] %vm808, %v745
        %811 = vst.msk [vmem:[%s230 + $0x8] sm:$0xf] %vm808, %v746
        %812 = vst.msk [vmem:[%s230 + $0xc] sm:$0xf] %vm808, %v747
        %813 = vst.msk [vmem:[%s230 + $0x10] sm:$0xf] %vm808, %v748
        %814 = vst.msk [vmem:[%s230 + $0x14] sm:$0xf] %vm808, %v749
        %815 = vst.msk [vmem:[%s230 + $0x18] sm:$0xf] %vm808, %v750
        %816 = vst.msk [vmem:[%s230 + $0x1c] sm:$0xf] %vm808, %v751
        %817 = vst.msk [vmem:[%s230 + $0x20] sm:$0xf] %vm808, %v752
        %818 = vst.msk [vmem:[%s230 + $0x24] sm:$0xf] %vm808, %v753
        %819 = vst.msk [vmem:[%s230 + $0x28] sm:$0xf] %vm808, %v754
        %820 = vst.msk [vmem:[%s230 + $0x2c] sm:$0xf] %vm808, %v755
        %821 = vst.msk [vmem:[%s230 + $0x30] sm:$0xf] %vm808, %v756
        %822 = vst.msk [vmem:[%s230 + $0x34] sm:$0xf] %vm808, %v757
        %823 = vst.msk [vmem:[%s230 + $0x38] sm:$0xf] %vm808, %v758
        %824 = vst.msk [vmem:[%s230 + $0x3c] sm:$0xf] %vm808, %v759
        %825 = vst.msk [vmem:[%s230 + $0x40] sm:$0xf] %vm808, %v760
        %826 = vst.msk [vmem:[%s230 + $0x44] sm:$0xf] %vm808, %v761
        %827 = vst.msk [vmem:[%s230 + $0x48] sm:$0xf] %vm808, %v762
        %828 = vst.msk [vmem:[%s230 + $0x4c] sm:$0xf] %vm808, %v763
        %829 = vst.msk [vmem:[%s230 + $0x50] sm:$0xf] %vm808, %v764
        %830 = vst.msk [vmem:[%s230 + $0x54] sm:$0xf] %vm808, %v765
        %831 = vst.msk [vmem:[%s230 + $0x58] sm:$0xf] %vm808, %v766
        %832 = vst.msk [vmem:[%s230 + $0x5c] sm:$0xf] %vm808, %v767
        %833 = vst.msk [vmem:[%s230 + $0x60] sm:$0xf] %vm808, %v768
        %834 = vst.msk [vmem:[%s230 + $0x64] sm:$0xf] %vm808, %v769
        %835 = vst.msk [vmem:[%s230 + $0x68] sm:$0xf] %vm808, %v770
        %836 = vst.msk [vmem:[%s230 + $0x6c] sm:$0xf] %vm808, %v771
        %837 = vst.msk [vmem:[%s230 + $0x70] sm:$0xf] %vm808, %v772
        %838 = vst.msk [vmem:[%s230 + $0x74] sm:$0xf] %vm808, %v773
        %839 = vst.msk [vmem:[%s230 + $0x78] sm:$0xf] %vm808, %v774
        %840 = vst.msk [vmem:[%s230 + $0x7c] sm:$0xf] %vm808, %v775
        %s841 = sand.u32 %s119, 1
        %s842 = scalar_lea.sflag [#allocation4], %s841
        %s843 = sand.u32 %s119, 1
        %s844 = smul.addr %s843, 128
        %s845 = scalar_lea.vmem [#allocation7], %s844
        // Predicated region
        $region45: #{tpu_custom_call.1} parent=35 // pred_check
          %p846 = pneg %p129
        $region46: #{tpu_custom_call.1} parent=35 // pred_check_branch
          %848 = sbr.rel (%p846) target = $region48
        $region47: #{tpu_custom_call.1} parent=35 // pred_region
          %s850 = ssub.s32 2048, 2048
          %851 = vsyncadd %s842, %s850
          %s852 = smul.addr %s22, 32
          %s853 = smul.addr %s852, 64
          %s854 = scalar_lea.hbm %s4, %s853
          %s855 = sshll.u32 %s845, 4
          %s856 = int_to_ptr.vmem [resolvable:$true] %s855
          %861 = dma.vmem_to_hbm [thread:$0]  %s856, 2048, %s854, %s842, 64, 64, 4
        $region48: #{tpu_custom_call.1} parent=35 // pred_fallthru
          _
      $region36: #{tpu_custom_call.1} parent=5 // pred_fallthru
        _
      %p862 = scmp.le.s32.totalorder 2, %s17
      // Predicated region
      $region49: #{tpu_custom_call.1} parent=5 // pred_check
        %p863 = pneg %p862
      $region50: #{tpu_custom_call.1} parent=5 // pred_check_branch
        %865 = sbr.rel (%p863) target = $region52
      $region51: #{tpu_custom_call.1} parent=5 // pred_region
        %s866 = ssub.s32 %s17, 2
        // Predicated region
        $region53: #{tpu_custom_call.1} parent=51 // pred_check
          %p867 = pneg %p135
        $region54: #{tpu_custom_call.1} parent=51 // pred_check_branch
          %869 = sbr.rel (%p867) target = $region56
        $region55: #{tpu_custom_call.1} parent=51 // pred_region
          %s870 = sand.u32 %s120, 1
          %s871 = scalar_lea.sflag [#allocation4], %s870
          %s872 = sand.u32 %s120, 1
          %s873 = smul.addr %s872, 128
          %s874 = scalar_lea.vmem [#allocation7], %s873
          %875 = dma.done %s871, 2048
        $region56: #{tpu_custom_call.1} parent=51 // pred_fallthru
          _
      $region52: #{tpu_custom_call.1} parent=5 // pred_fallthru
        _
    $region6: #{tpu_custom_call.1} parent=1 // loop_footer
      %s21 = sadd.s32 1, %s17
    $region7: #{tpu_custom_call.1} parent=1 // loop_footer_branch
      %16 = sbr.rel target = $region3
    $region8: #{tpu_custom_call.1} parent=1 // loop_exit
      _
    %876 = vsyncpa [#allocation3], 1
    %s877 = scalar_lea.sflag [#allocation3], 1
    %878 = vsyncpa %s877, 1
    %879 = vsyncpa [#allocation6], 1
    %880 = vsyncpa [#allocation4], 1
    %s881 = scalar_lea.sflag [#allocation4], 1
    %882 = vsyncpa %s881, 1

</llo_original>
